<compile_context>
chip_gen: v7x
topology: tpu7x:2x2x1
jax: 0.10.0
libtpu: 0.0.40
codegen_flags: <defaults>
</compile_context>

<pallas_src>
import functools

import jax
import jax.numpy as jnp
from jax.experimental import pallas as pl
from jax.experimental.pallas import tpu as pltpu

# Target block sizes: bm multiple of 8 sublanes, bn multiple of 128 lanes.
_BM_TARGET = 256
_BN_TARGET = 1024


def _masked_bce_kernel(pred_ref, targ_ref, mask_ref, num_ref, den_ref,
                       num_acc, den_acc, *, true_b, true_s, bm, bn):
    i = pl.program_id(0)          # batch-block index ("parallel")
    j = pl.program_id(1)          # seq-block index   ("arbitrary" reduction)

    # Reset the VMEM vector accumulators at the start of each batch block.
    @pl.when(j == 0)
    def _():
        num_acc[...] = jnp.zeros_like(num_acc)
        den_acc[...] = jnp.zeros_like(den_acc)

    p = pred_ref[...].astype(jnp.float32)
    t = targ_ref[...].astype(jnp.float32)
    m = mask_ref[...].astype(jnp.float32)

    # Ragged-tail handling without a padding pre-pass: out-of-bounds lanes of
    # a partial block hold undefined data, so select them out explicitly.
    row = jax.lax.broadcasted_iota(jnp.int32, (bm, bn), 0) + i * bm
    col = jax.lax.broadcasted_iota(jnp.int32, (bm, bn), 1) + j * bn
    valid = (row < true_b) & (col < true_s)

    # nn.BCELoss(reduction='none'): -(t*log(p) + (1-t)*log(1-p)),
    # with log terms clamped at -100 (PyTorch semantics).
    # TODO(synk): if predictions come from an upstream sigmoid, a fused
    # BCE-with-logits variant would halve EUP transcendentals per element.
    log_p = jnp.maximum(jnp.log(p), jnp.float32(-100.0))
    log_1mp = jnp.maximum(jnp.log(1.0 - p), jnp.float32(-100.0))
    losses = -(t * log_p + (1.0 - t) * log_1mp)

    zero = jnp.float32(0.0)
    num_acc[...] += jnp.where(valid, losses * m, zero)   # pure VPU per step
    den_acc[...] += jnp.where(valid, m, zero)

    # Full reduction + SMEM store only once per batch block (last seq block).
    @pl.when(j == pl.num_programs(1) - 1)
    def _():
        num_ref[0, 0] = jnp.sum(num_acc[...])
        den_ref[0, 0] = jnp.sum(den_acc[...])


@jax.jit
def masked_bce_loss(predictions, targets, mask):
    """Pallas equivalent of MaskedBCELoss.forward -> scalar f32 loss."""
    B, S = predictions.shape

    # Block dims: full extent (always legal) or an (8,128)-aligned target.
    bm = B if B <= _BM_TARGET else _BM_TARGET
    bn = S if S <= _BN_TARGET else _BN_TARGET
    n_bb = pl.cdiv(B, bm)
    n_sb = pl.cdiv(S, bn)

    kernel = functools.partial(
        _masked_bce_kernel, true_b=B, true_s=S, bm=bm, bn=bn)

    bytes_in = (predictions.size * predictions.dtype.itemsize
                + targets.size * targets.dtype.itemsize
                + mask.size * mask.dtype.itemsize)
    cost = pl.CostEstimate(
        flops=6 * B * S,
        transcendentals=2 * B * S,
        bytes_accessed=bytes_in + 2 * n_bb * 4,
    )

    num, den = pl.pallas_call(
        kernel,
        out_shape=(
            jax.ShapeDtypeStruct((n_bb, 1), jnp.float32),
            jax.ShapeDtypeStruct((n_bb, 1), jnp.float32),
        ),
        grid_spec=pltpu.PrefetchScalarGridSpec(
            num_scalar_prefetch=0,
            grid=(n_bb, n_sb),
            in_specs=[
                pl.BlockSpec((bm, bn), lambda i, j: (i, j)),
                pl.BlockSpec((bm, bn), lambda i, j: (i, j)),
                pl.BlockSpec((bm, bn), lambda i, j: (i, j)),
            ],
            out_specs=[
                pl.BlockSpec((1, 1), lambda i, j: (i, 0),
                             memory_space=pltpu.MemorySpace.SMEM),
                pl.BlockSpec((1, 1), lambda i, j: (i, 0),
                             memory_space=pltpu.MemorySpace.SMEM),
            ],
            scratch_shapes=[
                pltpu.VMEM((bm, bn), jnp.float32),
                pltpu.VMEM((bm, bn), jnp.float32),
            ],
        ),
        compiler_params=pltpu.CompilerParams(
            dimension_semantics=("parallel", "arbitrary"),
            vmem_limit_bytes=32 * 1024 * 1024,
        ),
        cost_estimate=cost,
    )(predictions, targets, mask)

    # Tiny final reduction + divide in plain JAX (one value per batch block).
    return (jnp.sum(num) / jnp.sum(den)).astype(jnp.float32)


def _reference(predictions, targets, mask):
    """Pure-JAX reference matching torch BCELoss semantics."""
    p = predictions.astype(jnp.float32)
    t = targets.astype(jnp.float32)
    m = mask.astype(jnp.float32)
    log_p = jnp.maximum(jnp.log(p), -100.0)
    log_1mp = jnp.maximum(jnp.log(1.0 - p), -100.0)
    losses = -(t * log_p + (1.0 - t) * log_1mp)
    return jnp.sum(losses * m) / jnp.sum(m)


if __name__ == "__main__":
    key = jax.random.PRNGKey(0)

    # Case 1: module-sized example (batch=2, seq=8) with a ragged mask.
    k1, k2, key = jax.random.split(key, 3)
    batch, seq = 2, 8
    predictions = jax.nn.sigmoid(
        jax.random.normal(k1, (batch, seq), dtype=jnp.float32))
    targets = jax.random.bernoulli(k2, 0.5, (batch, seq)).astype(jnp.float32)
    lengths = jnp.array([6, 4], dtype=jnp.int32)
    mask = (jnp.arange(seq)[None, :] < lengths[:, None]).astype(jnp.float32)

    loss = masked_bce_loss(predictions, targets, mask)
    jax.block_until_ready(loss)
    ref = _reference(predictions, targets, mask)
    assert jnp.allclose(loss, ref, rtol=1e-5, atol=1e-6), (loss, ref)

    # Case 2: ragged, multi-tile shape exercising partial (OOB-masked) blocks.
    k3, k4, k5 = jax.random.split(key, 3)
    b2, s2 = 20, 2500
    p2 = jax.nn.sigmoid(jax.random.normal(k3, (b2, s2), dtype=jnp.float32))
    t2 = jax.random.bernoulli(k4, 0.5, (b2, s2)).astype(jnp.float32)
    len2 = jax.random.randint(k5, (b2,), 1, s2 + 1)
    m2 = (jnp.arange(s2)[None, :] < len2[:, None]).astype(jnp.float32)

    loss2 = masked_bce_loss(p2, t2, m2)
    jax.block_until_ready(loss2)
    ref2 = _reference(p2, t2, m2)
    assert jnp.allclose(loss2, ref2, rtol=1e-4, atol=1e-5), (loss2, ref2)

    print("KERNEL_OK")
</pallas_src>

<mosaic_0001>
module attributes {stable_mosaic.version = 11 : i64} {
  func.func @_masked_bce_kernel(%arg0: i32, %arg1: i32, %arg2: memref<2x8xf32, #tpu.memory_space<vmem>>, %arg3: memref<2x8xf32, #tpu.memory_space<vmem>>, %arg4: memref<2x8xf32, #tpu.memory_space<vmem>>, %arg5: memref<1x1xf32, #tpu.memory_space<smem>>, %arg6: memref<1x1xf32, #tpu.memory_space<smem>>, %arg7: memref<2x8xf32, #tpu.memory_space<vmem>>, %arg8: memref<2x8xf32, #tpu.memory_space<vmem>>) attributes {dimension_semantics = [#tpu.dimension_semantics<parallel>, #tpu.dimension_semantics<arbitrary>], iteration_bounds = array<i64: 1, 1>, scalar_prefetch = 0 : i64, scratch_operands = 2 : i64, tpu.core_type = #tpu.core_type<tc>, window_params = [{transform_indices = @transform_0, window_bounds = array<i64: 2, 8>}, {transform_indices = @transform_1, window_bounds = array<i64: 2, 8>}, {transform_indices = @transform_2, window_bounds = array<i64: 2, 8>}, {transform_indices = @transform_3, window_bounds = array<i64: 1, 1>}, {transform_indices = @transform_4, window_bounds = array<i64: 1, 1>}]} {
    %c0_i32 = arith.constant 0 : i32
    %0 = arith.cmpi eq, %arg1, %c0_i32 : i32
    %1 = arith.extui %0 : i1 to i32
    %c0_i32_0 = arith.constant 0 : i32
    %2 = arith.cmpi ne, %1, %c0_i32_0 : i32
    scf.if %2 {
      %cst_24 = arith.constant 0.000000e+00 : f32
      %48 = vector.broadcast %cst_24 : f32 to vector<2x8xf32>
      %c0_25 = arith.constant 0 : index
      %c0_26 = arith.constant 0 : index
      %49 = vector.load %arg7[%c0_25, %c0_26] : memref<2x8xf32, #tpu.memory_space<vmem>>, vector<2x8xf32>
      tpu.vector_store %arg7[%c0_25, %c0_26], %48 {strides = array<i32>} : memref<2x8xf32, #tpu.memory_space<vmem>>, vector<2x8xf32>,
      %cst_27 = arith.constant 0.000000e+00 : f32
      %50 = vector.broadcast %cst_27 : f32 to vector<2x8xf32>
      %c0_28 = arith.constant 0 : index
      %c0_29 = arith.constant 0 : index
      %51 = vector.load %arg8[%c0_28, %c0_29] : memref<2x8xf32, #tpu.memory_space<vmem>>, vector<2x8xf32>
      tpu.vector_store %arg8[%c0_28, %c0_29], %50 {strides = array<i32>} : memref<2x8xf32, #tpu.memory_space<vmem>>, vector<2x8xf32>,
    } else {
    }
    %c0 = arith.constant 0 : index
    %c0_1 = arith.constant 0 : index
    %3 = vector.load %arg2[%c0, %c0_1] : memref<2x8xf32, #tpu.memory_space<vmem>>, vector<2x8xf32>
    %c0_2 = arith.constant 0 : index
    %c0_3 = arith.constant 0 : index
    %4 = vector.load %arg3[%c0_2, %c0_3] : memref<2x8xf32, #tpu.memory_space<vmem>>, vector<2x8xf32>
    %c0_4 = arith.constant 0 : index
    %c0_5 = arith.constant 0 : index
    %5 = vector.load %arg4[%c0_4, %c0_5] : memref<2x8xf32, #tpu.memory_space<vmem>>, vector<2x8xf32>
    %6 = tpu.iota {dimensions = array<i32: 0>} : vector<2x8xi32>
    %c2_i32 = arith.constant 2 : i32
    %7 = arith.muli %arg0, %c2_i32 : i32
    %8 = vector.broadcast %7 : i32 to vector<2x8xi32>
    %9 = arith.addi %6, %8 : vector<2x8xi32>
    %10 = tpu.iota {dimensions = array<i32: 1>} : vector<2x8xi32>
    %c8_i32 = arith.constant 8 : i32
    %11 = arith.muli %arg1, %c8_i32 : i32
    %12 = vector.broadcast %11 : i32 to vector<2x8xi32>
    %13 = arith.addi %10, %12 : vector<2x8xi32>
    %c2_i32_6 = arith.constant 2 : i32
    %14 = vector.broadcast %c2_i32_6 : i32 to vector<2x8xi32>
    %15 = arith.cmpi slt, %9, %14 : vector<2x8xi32>
    %c8_i32_7 = arith.constant 8 : i32
    %16 = vector.broadcast %c8_i32_7 : i32 to vector<2x8xi32>
    %17 = arith.cmpi slt, %13, %16 : vector<2x8xi32>
    %18 = arith.andi %15, %17 : vector<2x8xi1>
    %19 = math.log %3 : vector<2x8xf32>
    %cst = arith.constant -1.000000e+02 : f32
    %20 = vector.broadcast %cst : f32 to vector<2x8xf32>
    %21 = arith.maximumf %19, %20 : vector<2x8xf32>
    %cst_8 = arith.constant 1.000000e+00 : f32
    %22 = vector.broadcast %cst_8 : f32 to vector<2x8xf32>
    %23 = arith.subf %22, %3 : vector<2x8xf32>
    %24 = math.log %23 : vector<2x8xf32>
    %cst_9 = arith.constant -1.000000e+02 : f32
    %25 = vector.broadcast %cst_9 : f32 to vector<2x8xf32>
    %26 = arith.maximumf %24, %25 : vector<2x8xf32>
    %27 = arith.mulf %4, %21 : vector<2x8xf32>
    %cst_10 = arith.constant 1.000000e+00 : f32
    %28 = vector.broadcast %cst_10 : f32 to vector<2x8xf32>
    %29 = arith.subf %28, %4 : vector<2x8xf32>
    %30 = arith.mulf %29, %26 : vector<2x8xf32>
    %31 = arith.addf %27, %30 : vector<2x8xf32>
    %cst_11 = arith.constant 0.000000e+00 : f32
    %32 = vector.broadcast %cst_11 : f32 to vector<2x8xf32>
    %33 = arith.subf %32, %31 : vector<2x8xf32>
    %c0_12 = arith.constant 0 : index
    %c0_13 = arith.constant 0 : index
    %34 = vector.load %arg7[%c0_12, %c0_13] : memref<2x8xf32, #tpu.memory_space<vmem>>, vector<2x8xf32>
    %35 = arith.mulf %33, %5 : vector<2x8xf32>
    %cst_14 = arith.constant 0.000000e+00 : f32
    %36 = vector.broadcast %cst_14 : f32 to vector<2x8xf32>
    %37 = arith.select %18, %35, %36 : vector<2x8xi1>, vector<2x8xf32>
    %38 = arith.addf %34, %37 : vector<2x8xf32>
    %c0_15 = arith.constant 0 : index
    %c0_16 = arith.constant 0 : index
    %39 = vector.load %arg7[%c0_15, %c0_16] : memref<2x8xf32, #tpu.memory_space<vmem>>, vector<2x8xf32>
    tpu.vector_store %arg7[%c0_15, %c0_16], %38 {strides = array<i32>} : memref<2x8xf32, #tpu.memory_space<vmem>>, vector<2x8xf32>,
    %c0_17 = arith.constant 0 : index
    %c0_18 = arith.constant 0 : index
    %40 = vector.load %arg8[%c0_17, %c0_18] : memref<2x8xf32, #tpu.memory_space<vmem>>, vector<2x8xf32>
    %cst_19 = arith.constant 0.000000e+00 : f32
    %41 = vector.broadcast %cst_19 : f32 to vector<2x8xf32>
    %42 = arith.select %18, %5, %41 : vector<2x8xi1>, vector<2x8xf32>
    %43 = arith.addf %40, %42 : vector<2x8xf32>
    %c0_20 = arith.constant 0 : index
    %c0_21 = arith.constant 0 : index
    %44 = vector.load %arg8[%c0_20, %c0_21] : memref<2x8xf32, #tpu.memory_space<vmem>>, vector<2x8xf32>
    tpu.vector_store %arg8[%c0_20, %c0_21], %43 {strides = array<i32>} : memref<2x8xf32, #tpu.memory_space<vmem>>, vector<2x8xf32>,
    %c0_i32_22 = arith.constant 0 : i32
    %45 = arith.cmpi eq, %arg1, %c0_i32_22 : i32
    %46 = arith.extui %45 : i1 to i32
    %c0_i32_23 = arith.constant 0 : i32
    %47 = arith.cmpi ne, %46, %c0_i32_23 : i32
    scf.if %47 {
      %c0_24 = arith.constant 0 : index
      %c0_25 = arith.constant 0 : index
      %48 = vector.load %arg7[%c0_24, %c0_25] : memref<2x8xf32, #tpu.memory_space<vmem>>, vector<2x8xf32>
      %49 = vector.shape_cast %48 : vector<2x8xf32> to vector<1x2x8xf32>
      %cst_26 = arith.constant dense<0.000000e+00> : vector<1xf32>
      %50 = vector.multi_reduction <add>, %49, %cst_26 [1, 2] : vector<1x2x8xf32> to vector<1xf32>
      %51 = vector.shape_cast %50 : vector<1xf32> to vector<1x1x1xf32>
      %52 = vector.extract %51[0, 0, 0] : f32 from vector<1x1x1xf32>
      %c0_27 = arith.constant 0 : index
      %c0_28 = arith.constant 0 : index
      %53 = memref.load %arg5[%c0_27, %c0_28] : memref<1x1xf32, #tpu.memory_space<smem>>
      memref.store %52, %arg5[%c0_27, %c0_28] : memref<1x1xf32, #tpu.memory_space<smem>>
      %c0_29 = arith.constant 0 : index
      %c0_30 = arith.constant 0 : index
      %54 = vector.load %arg8[%c0_29, %c0_30] : memref<2x8xf32, #tpu.memory_space<vmem>>, vector<2x8xf32>
      %55 = vector.shape_cast %54 : vector<2x8xf32> to vector<1x2x8xf32>
      %cst_31 = arith.constant dense<0.000000e+00> : vector<1xf32>
      %56 = vector.multi_reduction <add>, %55, %cst_31 [1, 2] : vector<1x2x8xf32> to vector<1xf32>
      %57 = vector.shape_cast %56 : vector<1xf32> to vector<1x1x1xf32>
      %58 = vector.extract %57[0, 0, 0] : f32 from vector<1x1x1xf32>
      %c0_32 = arith.constant 0 : index
      %c0_33 = arith.constant 0 : index
      %59 = memref.load %arg6[%c0_32, %c0_33] : memref<1x1xf32, #tpu.memory_space<smem>>
      memref.store %58, %arg6[%c0_32, %c0_33] : memref<1x1xf32, #tpu.memory_space<smem>>
    } else {
    }
    return
  }
  func.func @transform_0(%arg0: i32, %arg1: i32) -> (i32, i32) {
    %c0_i32 = arith.constant 0 : i32
    return %arg0, %arg1 : i32, i32
  }
  func.func @transform_1(%arg0: i32, %arg1: i32) -> (i32, i32) {
    %c0_i32 = arith.constant 0 : i32
    return %arg0, %arg1 : i32, i32
  }
  func.func @transform_2(%arg0: i32, %arg1: i32) -> (i32, i32) {
    %c0_i32 = arith.constant 0 : i32
    return %arg0, %arg1 : i32, i32
  }
  func.func @transform_3(%arg0: i32, %arg1: i32) -> (i32, i32) {
    %c0_i32 = arith.constant 0 : i32
    %c0_i32_0 = arith.constant 0 : i32
    return %arg0, %c0_i32 : i32, i32
  }
  func.func @transform_4(%arg0: i32, %arg1: i32) -> (i32, i32) {
    %c0_i32 = arith.constant 0 : i32
    %c0_i32_0 = arith.constant 0 : i32
    return %arg0, %c0_i32 : i32, i32
  }
}

</mosaic_0001>

<llo_original>
// kernel: masked_bce_loss.1
$region0: #{masked_bce_loss.1}
  #allocation0 [shape = 'u32[]', space=smem, size = 0x4, offset = 0x4, fixed_abs, tag = 'smem constant byte address 0x4 - core index']
  #allocation1 [shape = 'u32[144,128]{1,0:T(1,128)}', space=vmem, size = 0x12000, scoped, tag = 'internal scratch']
  #allocation2 [shape = 'f32[2,8]{1,0:T(2,128)}', space=vmem, size = 0x400, scoped, tag = 'scratch operand']
  #allocation3 [shape = 'f32[2,8]{1,0:T(2,128)}', space=vmem, size = 0x400, scoped, tag = 'scratch operand']
  %s0 = inlined_call_operand.hbm [shape: f32[2,8], index: 0, kind: input, shape index: {}]
  %s1 = inlined_call_operand.vmem [shape: f32[2,8], index: 1, kind: input, shape index: {}]
  %s2 = inlined_call_operand.vmem [shape: f32[2,8], index: 2, kind: input, shape index: {}]
  %s3 = inlined_call_operand.hbm [shape: f32[1,1], index: 3, kind: output, shape index: {0}]
  %s4 = inlined_call_operand.hbm [shape: f32[1,1], index: 4, kind: output, shape index: {1}]
  %5 = xla_tuple %s3, %s4
  %s6 = sld [smem:[#allocation0]]
  $region42: #{masked_bce_loss.1} parent=0
    _
  %s8 = ssub.s32 1, %s6
  %s9 = scalar_select 0, %s8, %s6
  $region1: #{masked_bce_loss.1} parent=0
    #allocation4 [shape = 'u8[1024]{0}', space=vmem, size = 0x400, scoped, tag = 'input window, operand 0, single buffered']
    #allocation5 [shape = 's32[1]{0}', space=sflag, size = 0x4, scoped, tag = 'scoped memory for masked_bce_loss.1']
    #allocation6 [shape = 's32[1]{0}', space=sflag, size = 0x4, scoped, tag = 'scoped memory for masked_bce_loss.1']
    #allocation7 [shape = 'u8[512]{0}', space=smem, size = 0x200, scoped, tag = 'output window, operand 0, single buffered']
    #allocation8 [shape = 'u8[512]{0}', space=smem, size = 0x200, scoped, tag = 'output window, operand 1, single buffered']
    #allocation9 [shape = 's32[1]{0}', space=sflag, size = 0x4, scoped, tag = 'scoped memory for masked_bce_loss.1']
    %10 = vsyncpa [#allocation5], 0
    %11 = vsyncpa [#allocation6], 0
    %12 = vsyncpa [#allocation9], 0
    // Predicated region
    $region2: #{masked_bce_loss.1} parent=1 // pred_check
      _
    $region3: #{masked_bce_loss.1} parent=1 // pred_check_branch
      %14 = sbr.rel (0) target = $region5
    $region4: #{masked_bce_loss.1} parent=1 // pred_region
      %s16 = ssub.s32 32, 32
      %17 = vsyncadd [#allocation5], %s16
      %s19 = sshll.u32 [#allocation4], 4
      %s20 = int_to_ptr.vmem [resolvable:$true] %s19
      %22 = dma.hbm_to_vmem [thread:$0]  %s0, 32, %s20, [#allocation5]
    $region5: #{masked_bce_loss.1} parent=1 // pred_fallthru
      _
    // Predicated region
    $region6: #{masked_bce_loss.1} parent=1 // pred_check
      _
    $region7: #{masked_bce_loss.1} parent=1 // pred_check_branch
      %24 = sbr.rel (0) target = $region9
    $region8: #{masked_bce_loss.1} parent=1 // pred_region
      _
    $region9: #{masked_bce_loss.1} parent=1 // pred_fallthru
      _
    // Predicated region
    $region10: #{masked_bce_loss.1} parent=1 // pred_check
      _
    $region11: #{masked_bce_loss.1} parent=1 // pred_check_branch
      %26 = sbr.rel (0) target = $region13
    $region12: #{masked_bce_loss.1} parent=1 // pred_region
      _
    $region13: #{masked_bce_loss.1} parent=1 // pred_fallthru
      _
    // Predicated region
    $region14: #{masked_bce_loss.1} parent=1 // pred_check
      _
    $region15: #{masked_bce_loss.1} parent=1 // pred_check_branch
      %28 = sbr.rel (0) target = $region17
    $region16: #{masked_bce_loss.1} parent=1 // pred_region
      %29 = dma.done [#allocation5], 32
    $region17: #{masked_bce_loss.1} parent=1 // pred_fallthru
      _
    %p30 = scmp.eq.s32.totalorder 0, 0
    // Predicated region
    $region18: #{masked_bce_loss.1} parent=1 // pred_check
      %p31 = pneg %p30
    $region19: #{masked_bce_loss.1} parent=1 // pred_check_branch
      %33 = sbr.rel (%p31) target = $region21
    $region20: #{masked_bce_loss.1} parent=1 // pred_region
      %vm34 = vcmask 58368
      %35 = vst.msk [vmem:[#allocation2] sm:$0x3] %vm34, 0.0
      %36 = vst.msk [vmem:[#allocation3] sm:$0x3] %vm34, 0.0
    $region21: #{masked_bce_loss.1} parent=1 // pred_fallthru
      _
    %v37 = vld [vmem:[#allocation4] sm:$0x3]
    %v38 = vld [vmem:[%s1] sm:$0x3]
    %v39 = vld [vmem:[%s2] sm:$0x3]
    %v40 = vlaneseq
    %v41 = vshrl.u32 %v40, 7
    %s42 = smul.u32 0, 2
    %v43 = vstv %s42
    %v44 = vadd.s32 %v41, %v43
    %v45 = vlaneseq
    %v46 = vand.u32 %v45, 127
    %s47 = smul.u32 0, 8
    %v48 = vstv %s47
    %v49 = vadd.s32 %v46, %v48
    %vm50 = vcmp.lt.s32.totalorder %v44, 2
    %vm51 = vcmp.lt.s32.totalorder %v49, 8
    %vm52 = vmand %vm50, %vm51
    %v53 = vlog2.pop %v37
    %v54 = vmul.f32 %v53, 0.6931472
    %v55 = vmax.f32 %v54, -100.0
    %v56 = vsub.f32 1.0, %v37
    %v57 = vlog2.pop %v56
    %v58 = vmul.f32 %v57, 0.6931472
    %v59 = vmax.f32 %v58, -100.0
    %v60 = vmul.f32 %v38, %v55
    %v61 = vsub.f32 1.0, %v38
    %v62 = vmul.f32 %v61, %v59
    %v63 = vadd.f32 %v60, %v62
    %v64 = vsub.f32 0.0, %v63
    %v65 = vld [vmem:[#allocation2] sm:$0x3]
    %v66 = vmul.f32 %v64, %v39
    %v67 = vsel %vm52, %v66, 0.0
    %v68 = vadd.f32 %v65, %v67
    %vm69 = vcmask 58368
    %70 = vst.msk [vmem:[#allocation2] sm:$0x3] %vm69, %v68
    %v71 = vld [vmem:[#allocation3] sm:$0x3]
    %v72 = vsel %vm52, %v39, 0.0
    %v73 = vadd.f32 %v71, %v72
    %74 = vst.msk [vmem:[#allocation3] sm:$0x3] %vm69, %v73
    // Predicated region
    $region22: #{masked_bce_loss.1} parent=1 // pred_check
      %p75 = pneg %p30
    $region23: #{masked_bce_loss.1} parent=1 // pred_check_branch
      %77 = sbr.rel (%p75) target = $region25
    $region24: #{masked_bce_loss.1} parent=1 // pred_region
      %v78 = vld [vmem:[#allocation2] sm:$0x3]
      %v79 = vsel %vm69, %v78, 0.0
      %80 = vadd.xlane.f32.xlu0 %v79
      %v81 = vpop.xlane.xlu0 %80
      %v82 = vrot.slane %v81, 4
      %v83 = vadd.f32 %v81, %v82
      %v84 = vrot.slane %v83, 2
      %v85 = vadd.f32 %v83, %v84
      %v86 = vrot.slane %v85, 1
      %v87 = vadd.f32 %v85, %v86
      %s88 = vtos %v87
      %s89 = scalar_lea.smem [#allocation7], 0
      %90 = sst [smem:[%s89]] %s88
      %v91 = vld [vmem:[#allocation3] sm:$0x3]
      %v92 = vsel %vm69, %v91, 0.0
      %93 = vadd.xlane.f32.xlu0 %v92
      %v94 = vpop.xlane.xlu0 %93
      %v95 = vrot.slane %v94, 4
      %v96 = vadd.f32 %v94, %v95
      %v97 = vrot.slane %v96, 2
      %v98 = vadd.f32 %v96, %v97
      %v99 = vrot.slane %v98, 1
      %v100 = vadd.f32 %v98, %v99
      %s101 = vtos %v100
      %s102 = scalar_lea.smem [#allocation8], 0
      %103 = sst [smem:[%s102]] %s101
    $region25: #{masked_bce_loss.1} parent=1 // pred_fallthru
      _
    // Predicated region
    $region26: #{masked_bce_loss.1} parent=1 // pred_check
      _
    $region27: #{masked_bce_loss.1} parent=1 // pred_check_branch
      %105 = sbr.rel (0) target = $region29
    $region28: #{masked_bce_loss.1} parent=1 // pred_region
      %s107 = ssub.s32 16, 16
      %108 = vsyncadd [#allocation6], %s107
      %111 = dma.smem_to_hbm [#allocation7], 16, %s3, [#allocation6]
    $region29: #{masked_bce_loss.1} parent=1 // pred_fallthru
      _
    // Predicated region
    $region30: #{masked_bce_loss.1} parent=1 // pred_check
      _
    $region31: #{masked_bce_loss.1} parent=1 // pred_check_branch
      %113 = sbr.rel (0) target = $region33
    $region32: #{masked_bce_loss.1} parent=1 // pred_region
      %s115 = ssub.s32 16, 16
      %116 = vsyncadd [#allocation9], %s115
      %119 = dma.smem_to_hbm [#allocation8], 16, %s4, [#allocation9]
    $region33: #{masked_bce_loss.1} parent=1 // pred_fallthru
      _
    // Predicated region
    $region34: #{masked_bce_loss.1} parent=1 // pred_check
      _
    $region35: #{masked_bce_loss.1} parent=1 // pred_check_branch
      %121 = sbr.rel (0) target = $region37
    $region36: #{masked_bce_loss.1} parent=1 // pred_region
      %122 = dma.done [#allocation6], 16
    $region37: #{masked_bce_loss.1} parent=1 // pred_fallthru
      _
    // Predicated region
    $region38: #{masked_bce_loss.1} parent=1 // pred_check
      _
    $region39: #{masked_bce_loss.1} parent=1 // pred_check_branch
      %124 = sbr.rel (0) target = $region41
    $region40: #{masked_bce_loss.1} parent=1 // pred_region
      %125 = dma.done [#allocation9], 16
    $region41: #{masked_bce_loss.1} parent=1 // pred_fallthru
      _
    %126 = sfence
    %127 = vsyncpa [#allocation5], 1
    %128 = vsyncpa [#allocation6], 1
    %129 = vsyncpa [#allocation9], 1

</llo_original>
